<compile_context>
chip_gen: v7x
topology: tpu7x:2x2x1
jax: 0.10.0
libtpu: 0.0.40
codegen_flags: <defaults>
</compile_context>

<pallas_src>
import jax
import jax.numpy as jnp
from jax.experimental import pallas as pl
from jax.experimental.pallas import tpu as pltpu

_EPS = 1e-6


def _grad_bands(x):
    """Central differences of x (..., H, W) with implicit zero padding.

    Returns row-bands of the vertical diff and column-bands of the horizontal
    diff:
      v_top (row 0), v_mid (rows 1..H-2), v_bot (row H-1)
      h_left (col 0), h_mid (cols 1..W-2), h_right (col W-1)
    """
    v_top = x[..., 1:2, :]                     # row 0     :  x[1, :]
    v_mid = x[..., 2:, :] - x[..., :-2, :]     # rows 1..H-2: x[i+1]-x[i-1]
    v_bot = -x[..., -2:-1, :]                  # row H-1   : -x[H-2, :]
    h_left = x[..., :, 1:2]                    # col 0     :  x[:, 1]
    h_mid = x[..., :, 2:] - x[..., :, :-2]     # cols 1..W-2
    h_right = -x[..., :, -2:-1]                # col W-1   : -x[:, W-2]
    return (v_top, v_mid, v_bot), (h_left, h_mid, h_right)


def _gmag(v, h):
    return jnp.sqrt(v * v + h * h + _EPS)


def _spatial_grad_l1_kernel(y_ref, gt_ref, out_ref):
    """y_ref / gt_ref: (TB, 1, H, W) VMEM blocks; out_ref: (1, 1) SMEM block."""
    y = y_ref[...].astype(jnp.float32)
    g = gt_ref[...].astype(jnp.float32)

    yv, yh = _grad_bands(y)
    gv, gh = _grad_bands(g)

    # Row selectors act on the horizontal-diff bands (which keep full H rows);
    # column selectors act on the vertical-diff bands (which keep full W cols).
    row_sel = (lambda a: a[..., 0:1, :],     # top row
               lambda a: a[..., 1:-1, :],    # interior rows
               lambda a: a[..., -1:, :])     # bottom row
    col_sel = (lambda a: a[..., :, 0:1],     # left col
               lambda a: a[..., :, 1:-1],    # interior cols
               lambda a: a[..., :, -1:])     # right col

    total = jnp.float32(0.0)
    for r in range(3):          # unrolled at trace time: 9 regions
        for c in range(3):
            vy, vg = col_sel[c](yv[r]), col_sel[c](gv[r])
            hy, hg = row_sel[r](yh[c]), row_sel[r](gh[c])
            total += jnp.sum(jnp.abs(_gmag(vy, hy) - _gmag(vg, hg)))
    out_ref[0, 0] = total


def _pick_block_batch(batch, h, w, max_block_elems):
    """Largest divisor of `batch` whose (tb, H, W) block stays under budget."""
    tb = max(1, min(batch, max_block_elems // max(h * w, 1)))
    while batch % tb:
        tb -= 1
    return tb


def spatial_grad_loss(y, gt, weight=1.0, *, max_block_elems=1 << 18):
    """Pallas TPU implementation of spatial_grad(weight)(y, gt)."""
    assert y.shape == gt.shape, (y.shape, gt.shape)
    B, C, H, W = y.shape
    # TODO(synk): support degenerate H < 3 or W < 3 (empty interior bands).
    assert H >= 3 and W >= 3, "spatial_grad_loss requires H, W >= 3"

    tb = _pick_block_batch(B, H, W, max_block_elems)
    num_blocks = B // tb

    itemsize = jnp.dtype(y.dtype).itemsize
    block_bytes = tb * H * W * itemsize
    # 2 inputs x 2 pipeline buffers + generous allowance for in-kernel f32
    # temporaries; clamp so it stays comfortably inside v7x's 64 MiB VMEM.
    vmem_limit = 4 * block_bytes + 20 * tb * H * W * 4 + (4 << 20)
    vmem_limit = int(max(16 << 20, min(vmem_limit, 56 << 20)))

    n = B * H * W
    cost = pl.CostEstimate(
        flops=15 * n,
        transcendentals=2 * n,
        bytes_accessed=2 * n * itemsize + num_blocks * 4,
    )

    partials = pl.pallas_call(
        _spatial_grad_l1_kernel,
        out_shape=jax.ShapeDtypeStruct((num_blocks, 1), jnp.float32),
        grid_spec=pltpu.PrefetchScalarGridSpec(
            num_scalar_prefetch=0,
            grid=(num_blocks,),
            in_specs=[
                pl.BlockSpec((tb, 1, H, W), lambda i: (i, 0, 0, 0)),
                pl.BlockSpec((tb, 1, H, W), lambda i: (i, 0, 0, 0)),
            ],
            out_specs=pl.BlockSpec(
                (1, 1), lambda i: (i, 0), memory_space=pltpu.SMEM
            ),
        ),
        compiler_params=pltpu.CompilerParams(
            dimension_semantics=("parallel",),
            vmem_limit_bytes=vmem_limit,
        ),
        cost_estimate=cost,
    )(y, gt)

    return jnp.float32(weight / float(n)) * jnp.sum(partials)


def spatial_grad_ref(y, gt, weight=1.0):
    """Pure-JAX reference mirroring the PyTorch module."""

    def get_grad(x):
        x0 = x[:, 0].astype(jnp.float32)
        xp = jnp.pad(x0, ((0, 0), (1, 1), (1, 1)))
        v = xp[:, 2:, 1:-1] - xp[:, :-2, 1:-1]
        h = xp[:, 1:-1, 2:] - xp[:, 1:-1, :-2]
        return jnp.sqrt(v * v + h * h + 1e-6)

    return jnp.float32(weight) * jnp.mean(jnp.abs(get_grad(y) - get_grad(gt)))


if __name__ == "__main__":
    key = jax.random.PRNGKey(0)
    k1, k2 = jax.random.split(key)
    B, C, H, W = 2, 4, 16, 16
    y = jax.random.normal(k1, (B, C, H, W), dtype=jnp.float32)
    gt = jax.random.normal(k2, (B, C, H, W), dtype=jnp.float32)

    out = spatial_grad_loss(y, gt, weight=0.5)
    out = jax.block_until_ready(out)

    ref = spatial_grad_ref(y, gt, weight=0.5)
    assert jnp.allclose(out, ref, rtol=1e-5, atol=1e-6), (out, ref)

    print("KERNEL_OK")
</pallas_src>

<mosaic_0001>
module attributes {stable_mosaic.version = 11 : i64} {
  func.func @_spatial_grad_l1_kernel(%arg0: i32, %arg1: memref<2x1x16x16xf32, #tpu.memory_space<vmem>>, %arg2: memref<2x1x16x16xf32, #tpu.memory_space<vmem>>, %arg3: memref<1x1xf32, #tpu.memory_space<smem>>) attributes {dimension_semantics = [#tpu.dimension_semantics<parallel>], iteration_bounds = array<i64: 1>, scalar_prefetch = 0 : i64, scratch_operands = 0 : i64, tpu.core_type = #tpu.core_type<tc>, window_params = [{transform_indices = @transform_0, window_bounds = array<i64: 2, 1, 16, 16>}, {transform_indices = @transform_1, window_bounds = array<i64: 2, 1, 16, 16>}, {transform_indices = @transform_2, window_bounds = array<i64: 1, 1>}]} {
    %c0 = arith.constant 0 : index
    %c0_0 = arith.constant 0 : index
    %c0_1 = arith.constant 0 : index
    %c0_2 = arith.constant 0 : index
    %0 = vector.load %arg1[%c0, %c0_0, %c0_1, %c0_2] : memref<2x1x16x16xf32, #tpu.memory_space<vmem>>, vector<2x1x16x16xf32>
    %c0_3 = arith.constant 0 : index
    %c0_4 = arith.constant 0 : index
    %c0_5 = arith.constant 0 : index
    %c0_6 = arith.constant 0 : index
    %1 = vector.load %arg2[%c0_3, %c0_4, %c0_5, %c0_6] : memref<2x1x16x16xf32, #tpu.memory_space<vmem>>, vector<2x1x16x16xf32>
    %2 = vector.extract_strided_slice %0 {offsets = [0, 0, 1, 0], sizes = [2, 1, 1, 16], strides = [1, 1, 1, 1]} : vector<2x1x16x16xf32> to vector<2x1x1x16xf32>
    %3 = vector.extract_strided_slice %0 {offsets = [0, 0, 2, 0], sizes = [2, 1, 14, 16], strides = [1, 1, 1, 1]} : vector<2x1x16x16xf32> to vector<2x1x14x16xf32>
    %4 = vector.extract_strided_slice %0 {offsets = [0, 0, 0, 0], sizes = [2, 1, 14, 16], strides = [1, 1, 1, 1]} : vector<2x1x16x16xf32> to vector<2x1x14x16xf32>
    %5 = arith.subf %3, %4 : vector<2x1x14x16xf32>
    %6 = vector.extract_strided_slice %0 {offsets = [0, 0, 14, 0], sizes = [2, 1, 1, 16], strides = [1, 1, 1, 1]} : vector<2x1x16x16xf32> to vector<2x1x1x16xf32>
    %cst = arith.constant 0.000000e+00 : f32
    %7 = vector.broadcast %cst : f32 to vector<2x1x1x16xf32>
    %8 = arith.subf %7, %6 : vector<2x1x1x16xf32>
    %9 = vector.extract_strided_slice %0 {offsets = [0, 0, 0, 1], sizes = [2, 1, 16, 1], strides = [1, 1, 1, 1]} : vector<2x1x16x16xf32> to vector<2x1x16x1xf32>
    %10 = vector.extract_strided_slice %0 {offsets = [0, 0, 0, 2], sizes = [2, 1, 16, 14], strides = [1, 1, 1, 1]} : vector<2x1x16x16xf32> to vector<2x1x16x14xf32>
    %11 = vector.extract_strided_slice %0 {offsets = [0, 0, 0, 0], sizes = [2, 1, 16, 14], strides = [1, 1, 1, 1]} : vector<2x1x16x16xf32> to vector<2x1x16x14xf32>
    %12 = arith.subf %10, %11 : vector<2x1x16x14xf32>
    %13 = vector.extract_strided_slice %0 {offsets = [0, 0, 0, 14], sizes = [2, 1, 16, 1], strides = [1, 1, 1, 1]} : vector<2x1x16x16xf32> to vector<2x1x16x1xf32>
    %cst_7 = arith.constant 0.000000e+00 : f32
    %14 = vector.broadcast %cst_7 : f32 to vector<2x1x16x1xf32>
    %15 = arith.subf %14, %13 : vector<2x1x16x1xf32>
    %16 = vector.extract_strided_slice %1 {offsets = [0, 0, 1, 0], sizes = [2, 1, 1, 16], strides = [1, 1, 1, 1]} : vector<2x1x16x16xf32> to vector<2x1x1x16xf32>
    %17 = vector.extract_strided_slice %1 {offsets = [0, 0, 2, 0], sizes = [2, 1, 14, 16], strides = [1, 1, 1, 1]} : vector<2x1x16x16xf32> to vector<2x1x14x16xf32>
    %18 = vector.extract_strided_slice %1 {offsets = [0, 0, 0, 0], sizes = [2, 1, 14, 16], strides = [1, 1, 1, 1]} : vector<2x1x16x16xf32> to vector<2x1x14x16xf32>
    %19 = arith.subf %17, %18 : vector<2x1x14x16xf32>
    %20 = vector.extract_strided_slice %1 {offsets = [0, 0, 14, 0], sizes = [2, 1, 1, 16], strides = [1, 1, 1, 1]} : vector<2x1x16x16xf32> to vector<2x1x1x16xf32>
    %cst_8 = arith.constant 0.000000e+00 : f32
    %21 = vector.broadcast %cst_8 : f32 to vector<2x1x1x16xf32>
    %22 = arith.subf %21, %20 : vector<2x1x1x16xf32>
    %23 = vector.extract_strided_slice %1 {offsets = [0, 0, 0, 1], sizes = [2, 1, 16, 1], strides = [1, 1, 1, 1]} : vector<2x1x16x16xf32> to vector<2x1x16x1xf32>
    %24 = vector.extract_strided_slice %1 {offsets = [0, 0, 0, 2], sizes = [2, 1, 16, 14], strides = [1, 1, 1, 1]} : vector<2x1x16x16xf32> to vector<2x1x16x14xf32>
    %25 = vector.extract_strided_slice %1 {offsets = [0, 0, 0, 0], sizes = [2, 1, 16, 14], strides = [1, 1, 1, 1]} : vector<2x1x16x16xf32> to vector<2x1x16x14xf32>
    %26 = arith.subf %24, %25 : vector<2x1x16x14xf32>
    %27 = vector.extract_strided_slice %1 {offsets = [0, 0, 0, 14], sizes = [2, 1, 16, 1], strides = [1, 1, 1, 1]} : vector<2x1x16x16xf32> to vector<2x1x16x1xf32>
    %cst_9 = arith.constant 0.000000e+00 : f32
    %28 = vector.broadcast %cst_9 : f32 to vector<2x1x16x1xf32>
    %29 = arith.subf %28, %27 : vector<2x1x16x1xf32>
    %30 = vector.extract_strided_slice %2 {offsets = [0, 0, 0, 0], sizes = [2, 1, 1, 1], strides = [1, 1, 1, 1]} : vector<2x1x1x16xf32> to vector<2x1x1x1xf32>
    %31 = vector.extract_strided_slice %16 {offsets = [0, 0, 0, 0], sizes = [2, 1, 1, 1], strides = [1, 1, 1, 1]} : vector<2x1x1x16xf32> to vector<2x1x1x1xf32>
    %32 = vector.extract_strided_slice %9 {offsets = [0, 0, 0, 0], sizes = [2, 1, 1, 1], strides = [1, 1, 1, 1]} : vector<2x1x16x1xf32> to vector<2x1x1x1xf32>
    %33 = vector.extract_strided_slice %23 {offsets = [0, 0, 0, 0], sizes = [2, 1, 1, 1], strides = [1, 1, 1, 1]} : vector<2x1x16x1xf32> to vector<2x1x1x1xf32>
    %34 = arith.mulf %30, %30 : vector<2x1x1x1xf32>
    %35 = arith.mulf %32, %32 : vector<2x1x1x1xf32>
    %36 = arith.addf %34, %35 : vector<2x1x1x1xf32>
    %cst_10 = arith.constant 9.99999997E-7 : f32
    %37 = vector.broadcast %cst_10 : f32 to vector<2x1x1x1xf32>
    %38 = arith.addf %36, %37 : vector<2x1x1x1xf32>
    %39 = math.sqrt %38 : vector<2x1x1x1xf32>
    %40 = arith.mulf %31, %31 : vector<2x1x1x1xf32>
    %41 = arith.mulf %33, %33 : vector<2x1x1x1xf32>
    %42 = arith.addf %40, %41 : vector<2x1x1x1xf32>
    %cst_11 = arith.constant 9.99999997E-7 : f32
    %43 = vector.broadcast %cst_11 : f32 to vector<2x1x1x1xf32>
    %44 = arith.addf %42, %43 : vector<2x1x1x1xf32>
    %45 = math.sqrt %44 : vector<2x1x1x1xf32>
    %46 = arith.subf %39, %45 : vector<2x1x1x1xf32>
    %47 = math.absf %46 : vector<2x1x1x1xf32>
    %48 = vector.shape_cast %47 : vector<2x1x1x1xf32> to vector<1x2x1x1x1xf32>
    %cst_12 = arith.constant dense<0.000000e+00> : vector<1xf32>
    %49 = vector.multi_reduction <add>, %48, %cst_12 [1, 2, 3, 4] : vector<1x2x1x1x1xf32> to vector<1xf32>
    %50 = vector.shape_cast %49 : vector<1xf32> to vector<1x1x1x1x1xf32>
    %51 = vector.extract %50[0, 0, 0, 0, 0] : f32 from vector<1x1x1x1x1xf32>
    %cst_13 = arith.constant 0.000000e+00 : f32
    %52 = arith.addf %cst_13, %51 : f32
    %53 = vector.extract_strided_slice %2 {offsets = [0, 0, 0, 1], sizes = [2, 1, 1, 14], strides = [1, 1, 1, 1]} : vector<2x1x1x16xf32> to vector<2x1x1x14xf32>
    %54 = vector.extract_strided_slice %16 {offsets = [0, 0, 0, 1], sizes = [2, 1, 1, 14], strides = [1, 1, 1, 1]} : vector<2x1x1x16xf32> to vector<2x1x1x14xf32>
    %55 = vector.extract_strided_slice %12 {offsets = [0, 0, 0, 0], sizes = [2, 1, 1, 14], strides = [1, 1, 1, 1]} : vector<2x1x16x14xf32> to vector<2x1x1x14xf32>
    %56 = vector.extract_strided_slice %26 {offsets = [0, 0, 0, 0], sizes = [2, 1, 1, 14], strides = [1, 1, 1, 1]} : vector<2x1x16x14xf32> to vector<2x1x1x14xf32>
    %57 = arith.mulf %53, %53 : vector<2x1x1x14xf32>
    %58 = arith.mulf %55, %55 : vector<2x1x1x14xf32>
    %59 = arith.addf %57, %58 : vector<2x1x1x14xf32>
    %cst_14 = arith.constant 9.99999997E-7 : f32
    %60 = vector.broadcast %cst_14 : f32 to vector<2x1x1x14xf32>
    %61 = arith.addf %59, %60 : vector<2x1x1x14xf32>
    %62 = math.sqrt %61 : vector<2x1x1x14xf32>
    %63 = arith.mulf %54, %54 : vector<2x1x1x14xf32>
    %64 = arith.mulf %56, %56 : vector<2x1x1x14xf32>
    %65 = arith.addf %63, %64 : vector<2x1x1x14xf32>
    %cst_15 = arith.constant 9.99999997E-7 : f32
    %66 = vector.broadcast %cst_15 : f32 to vector<2x1x1x14xf32>
    %67 = arith.addf %65, %66 : vector<2x1x1x14xf32>
    %68 = math.sqrt %67 : vector<2x1x1x14xf32>
    %69 = arith.subf %62, %68 : vector<2x1x1x14xf32>
    %70 = math.absf %69 : vector<2x1x1x14xf32>
    %71 = vector.shape_cast %70 : vector<2x1x1x14xf32> to vector<1x2x1x1x14xf32>
    %cst_16 = arith.constant dense<0.000000e+00> : vector<1xf32>
    %72 = vector.multi_reduction <add>, %71, %cst_16 [1, 2, 3, 4] : vector<1x2x1x1x14xf32> to vector<1xf32>
    %73 = vector.shape_cast %72 : vector<1xf32> to vector<1x1x1x1x1xf32>
    %74 = vector.extract %73[0, 0, 0, 0, 0] : f32 from vector<1x1x1x1x1xf32>
    %75 = arith.addf %52, %74 : f32
    %76 = vector.extract_strided_slice %2 {offsets = [0, 0, 0, 15], sizes = [2, 1, 1, 1], strides = [1, 1, 1, 1]} : vector<2x1x1x16xf32> to vector<2x1x1x1xf32>
    %77 = vector.extract_strided_slice %16 {offsets = [0, 0, 0, 15], sizes = [2, 1, 1, 1], strides = [1, 1, 1, 1]} : vector<2x1x1x16xf32> to vector<2x1x1x1xf32>
    %78 = vector.extract_strided_slice %15 {offsets = [0, 0, 0, 0], sizes = [2, 1, 1, 1], strides = [1, 1, 1, 1]} : vector<2x1x16x1xf32> to vector<2x1x1x1xf32>
    %79 = vector.extract_strided_slice %29 {offsets = [0, 0, 0, 0], sizes = [2, 1, 1, 1], strides = [1, 1, 1, 1]} : vector<2x1x16x1xf32> to vector<2x1x1x1xf32>
    %80 = arith.mulf %76, %76 : vector<2x1x1x1xf32>
    %81 = arith.mulf %78, %78 : vector<2x1x1x1xf32>
    %82 = arith.addf %80, %81 : vector<2x1x1x1xf32>
    %cst_17 = arith.constant 9.99999997E-7 : f32
    %83 = vector.broadcast %cst_17 : f32 to vector<2x1x1x1xf32>
    %84 = arith.addf %82, %83 : vector<2x1x1x1xf32>
    %85 = math.sqrt %84 : vector<2x1x1x1xf32>
    %86 = arith.mulf %77, %77 : vector<2x1x1x1xf32>
    %87 = arith.mulf %79, %79 : vector<2x1x1x1xf32>
    %88 = arith.addf %86, %87 : vector<2x1x1x1xf32>
    %cst_18 = arith.constant 9.99999997E-7 : f32
    %89 = vector.broadcast %cst_18 : f32 to vector<2x1x1x1xf32>
    %90 = arith.addf %88, %89 : vector<2x1x1x1xf32>
    %91 = math.sqrt %90 : vector<2x1x1x1xf32>
    %92 = arith.subf %85, %91 : vector<2x1x1x1xf32>
    %93 = math.absf %92 : vector<2x1x1x1xf32>
    %94 = vector.shape_cast %93 : vector<2x1x1x1xf32> to vector<1x2x1x1x1xf32>
    %cst_19 = arith.constant dense<0.000000e+00> : vector<1xf32>
    %95 = vector.multi_reduction <add>, %94, %cst_19 [1, 2, 3, 4] : vector<1x2x1x1x1xf32> to vector<1xf32>
    %96 = vector.shape_cast %95 : vector<1xf32> to vector<1x1x1x1x1xf32>
    %97 = vector.extract %96[0, 0, 0, 0, 0] : f32 from vector<1x1x1x1x1xf32>
    %98 = arith.addf %75, %97 : f32
    %99 = vector.extract_strided_slice %5 {offsets = [0, 0, 0, 0], sizes = [2, 1, 14, 1], strides = [1, 1, 1, 1]} : vector<2x1x14x16xf32> to vector<2x1x14x1xf32>
    %100 = vector.extract_strided_slice %19 {offsets = [0, 0, 0, 0], sizes = [2, 1, 14, 1], strides = [1, 1, 1, 1]} : vector<2x1x14x16xf32> to vector<2x1x14x1xf32>
    %101 = vector.extract_strided_slice %9 {offsets = [0, 0, 1, 0], sizes = [2, 1, 14, 1], strides = [1, 1, 1, 1]} : vector<2x1x16x1xf32> to vector<2x1x14x1xf32>
    %102 = vector.extract_strided_slice %23 {offsets = [0, 0, 1, 0], sizes = [2, 1, 14, 1], strides = [1, 1, 1, 1]} : vector<2x1x16x1xf32> to vector<2x1x14x1xf32>
    %103 = arith.mulf %99, %99 : vector<2x1x14x1xf32>
    %104 = arith.mulf %101, %101 : vector<2x1x14x1xf32>
    %105 = arith.addf %103, %104 : vector<2x1x14x1xf32>
    %cst_20 = arith.constant 9.99999997E-7 : f32
    %106 = vector.broadcast %cst_20 : f32 to vector<2x1x14x1xf32>
    %107 = arith.addf %105, %106 : vector<2x1x14x1xf32>
    %108 = math.sqrt %107 : vector<2x1x14x1xf32>
    %109 = arith.mulf %100, %100 : vector<2x1x14x1xf32>
    %110 = arith.mulf %102, %102 : vector<2x1x14x1xf32>
    %111 = arith.addf %109, %110 : vector<2x1x14x1xf32>
    %cst_21 = arith.constant 9.99999997E-7 : f32
    %112 = vector.broadcast %cst_21 : f32 to vector<2x1x14x1xf32>
    %113 = arith.addf %111, %112 : vector<2x1x14x1xf32>
    %114 = math.sqrt %113 : vector<2x1x14x1xf32>
    %115 = arith.subf %108, %114 : vector<2x1x14x1xf32>
    %116 = math.absf %115 : vector<2x1x14x1xf32>
    %117 = vector.shape_cast %116 : vector<2x1x14x1xf32> to vector<1x2x1x14x1xf32>
    %cst_22 = arith.constant dense<0.000000e+00> : vector<1xf32>
    %118 = vector.multi_reduction <add>, %117, %cst_22 [1, 2, 3, 4] : vector<1x2x1x14x1xf32> to vector<1xf32>
    %119 = vector.shape_cast %118 : vector<1xf32> to vector<1x1x1x1x1xf32>
    %120 = vector.extract %119[0, 0, 0, 0, 0] : f32 from vector<1x1x1x1x1xf32>
    %121 = arith.addf %98, %120 : f32
    %122 = vector.extract_strided_slice %5 {offsets = [0, 0, 0, 1], sizes = [2, 1, 14, 14], strides = [1, 1, 1, 1]} : vector<2x1x14x16xf32> to vector<2x1x14x14xf32>
    %123 = vector.extract_strided_slice %19 {offsets = [0, 0, 0, 1], sizes = [2, 1, 14, 14], strides = [1, 1, 1, 1]} : vector<2x1x14x16xf32> to vector<2x1x14x14xf32>
    %124 = vector.extract_strided_slice %12 {offsets = [0, 0, 1, 0], sizes = [2, 1, 14, 14], strides = [1, 1, 1, 1]} : vector<2x1x16x14xf32> to vector<2x1x14x14xf32>
    %125 = vector.extract_strided_slice %26 {offsets = [0, 0, 1, 0], sizes = [2, 1, 14, 14], strides = [1, 1, 1, 1]} : vector<2x1x16x14xf32> to vector<2x1x14x14xf32>
    %126 = arith.mulf %122, %122 : vector<2x1x14x14xf32>
    %127 = arith.mulf %124, %124 : vector<2x1x14x14xf32>
    %128 = arith.addf %126, %127 : vector<2x1x14x14xf32>
    %cst_23 = arith.constant 9.99999997E-7 : f32
    %129 = vector.broadcast %cst_23 : f32 to vector<2x1x14x14xf32>
    %130 = arith.addf %128, %129 : vector<2x1x14x14xf32>
    %131 = math.sqrt %130 : vector<2x1x14x14xf32>
    %132 = arith.mulf %123, %123 : vector<2x1x14x14xf32>
    %133 = arith.mulf %125, %125 : vector<2x1x14x14xf32>
    %134 = arith.addf %132, %133 : vector<2x1x14x14xf32>
    %cst_24 = arith.constant 9.99999997E-7 : f32
    %135 = vector.broadcast %cst_24 : f32 to vector<2x1x14x14xf32>
    %136 = arith.addf %134, %135 : vector<2x1x14x14xf32>
    %137 = math.sqrt %136 : vector<2x1x14x14xf32>
    %138 = arith.subf %131, %137 : vector<2x1x14x14xf32>
    %139 = math.absf %138 : vector<2x1x14x14xf32>
    %140 = vector.shape_cast %139 : vector<2x1x14x14xf32> to vector<1x2x1x14x14xf32>
    %cst_25 = arith.constant dense<0.000000e+00> : vector<1xf32>
    %141 = vector.multi_reduction <add>, %140, %cst_25 [1, 2, 3, 4] : vector<1x2x1x14x14xf32> to vector<1xf32>
    %142 = vector.shape_cast %141 : vector<1xf32> to vector<1x1x1x1x1xf32>
    %143 = vector.extract %142[0, 0, 0, 0, 0] : f32 from vector<1x1x1x1x1xf32>
    %144 = arith.addf %121, %143 : f32
    %145 = vector.extract_strided_slice %5 {offsets = [0, 0, 0, 15], sizes = [2, 1, 14, 1], strides = [1, 1, 1, 1]} : vector<2x1x14x16xf32> to vector<2x1x14x1xf32>
    %146 = vector.extract_strided_slice %19 {offsets = [0, 0, 0, 15], sizes = [2, 1, 14, 1], strides = [1, 1, 1, 1]} : vector<2x1x14x16xf32> to vector<2x1x14x1xf32>
    %147 = vector.extract_strided_slice %15 {offsets = [0, 0, 1, 0], sizes = [2, 1, 14, 1], strides = [1, 1, 1, 1]} : vector<2x1x16x1xf32> to vector<2x1x14x1xf32>
    %148 = vector.extract_strided_slice %29 {offsets = [0, 0, 1, 0], sizes = [2, 1, 14, 1], strides = [1, 1, 1, 1]} : vector<2x1x16x1xf32> to vector<2x1x14x1xf32>
    %149 = arith.mulf %145, %145 : vector<2x1x14x1xf32>
    %150 = arith.mulf %147, %147 : vector<2x1x14x1xf32>
    %151 = arith.addf %149, %150 : vector<2x1x14x1xf32>
    %cst_26 = arith.constant 9.99999997E-7 : f32
    %152 = vector.broadcast %cst_26 : f32 to vector<2x1x14x1xf32>
    %153 = arith.addf %151, %152 : vector<2x1x14x1xf32>
    %154 = math.sqrt %153 : vector<2x1x14x1xf32>
    %155 = arith.mulf %146, %146 : vector<2x1x14x1xf32>
    %156 = arith.mulf %148, %148 : vector<2x1x14x1xf32>
    %157 = arith.addf %155, %156 : vector<2x1x14x1xf32>
    %cst_27 = arith.constant 9.99999997E-7 : f32
    %158 = vector.broadcast %cst_27 : f32 to vector<2x1x14x1xf32>
    %159 = arith.addf %157, %158 : vector<2x1x14x1xf32>
    %160 = math.sqrt %159 : vector<2x1x14x1xf32>
    %161 = arith.subf %154, %160 : vector<2x1x14x1xf32>
    %162 = math.absf %161 : vector<2x1x14x1xf32>
    %163 = vector.shape_cast %162 : vector<2x1x14x1xf32> to vector<1x2x1x14x1xf32>
    %cst_28 = arith.constant dense<0.000000e+00> : vector<1xf32>
    %164 = vector.multi_reduction <add>, %163, %cst_28 [1, 2, 3, 4] : vector<1x2x1x14x1xf32> to vector<1xf32>
    %165 = vector.shape_cast %164 : vector<1xf32> to vector<1x1x1x1x1xf32>
    %166 = vector.extract %165[0, 0, 0, 0, 0] : f32 from vector<1x1x1x1x1xf32>
    %167 = arith.addf %144, %166 : f32
    %168 = vector.extract_strided_slice %8 {offsets = [0, 0, 0, 0], sizes = [2, 1, 1, 1], strides = [1, 1, 1, 1]} : vector<2x1x1x16xf32> to vector<2x1x1x1xf32>
    %169 = vector.extract_strided_slice %22 {offsets = [0, 0, 0, 0], sizes = [2, 1, 1, 1], strides = [1, 1, 1, 1]} : vector<2x1x1x16xf32> to vector<2x1x1x1xf32>
    %170 = vector.extract_strided_slice %9 {offsets = [0, 0, 15, 0], sizes = [2, 1, 1, 1], strides = [1, 1, 1, 1]} : vector<2x1x16x1xf32> to vector<2x1x1x1xf32>
    %171 = vector.extract_strided_slice %23 {offsets = [0, 0, 15, 0], sizes = [2, 1, 1, 1], strides = [1, 1, 1, 1]} : vector<2x1x16x1xf32> to vector<2x1x1x1xf32>
    %172 = arith.mulf %168, %168 : vector<2x1x1x1xf32>
    %173 = arith.mulf %170, %170 : vector<2x1x1x1xf32>
    %174 = arith.addf %172, %173 : vector<2x1x1x1xf32>
    %cst_29 = arith.constant 9.99999997E-7 : f32
    %175 = vector.broadcast %cst_29 : f32 to vector<2x1x1x1xf32>
    %176 = arith.addf %174, %175 : vector<2x1x1x1xf32>
    %177 = math.sqrt %176 : vector<2x1x1x1xf32>
    %178 = arith.mulf %169, %169 : vector<2x1x1x1xf32>
    %179 = arith.mulf %171, %171 : vector<2x1x1x1xf32>
    %180 = arith.addf %178, %179 : vector<2x1x1x1xf32>
    %cst_30 = arith.constant 9.99999997E-7 : f32
    %181 = vector.broadcast %cst_30 : f32 to vector<2x1x1x1xf32>
    %182 = arith.addf %180, %181 : vector<2x1x1x1xf32>
    %183 = math.sqrt %182 : vector<2x1x1x1xf32>
    %184 = arith.subf %177, %183 : vector<2x1x1x1xf32>
    %185 = math.absf %184 : vector<2x1x1x1xf32>
    %186 = vector.shape_cast %185 : vector<2x1x1x1xf32> to vector<1x2x1x1x1xf32>
    %cst_31 = arith.constant dense<0.000000e+00> : vector<1xf32>
    %187 = vector.multi_reduction <add>, %186, %cst_31 [1, 2, 3, 4] : vector<1x2x1x1x1xf32> to vector<1xf32>
    %188 = vector.shape_cast %187 : vector<1xf32> to vector<1x1x1x1x1xf32>
    %189 = vector.extract %188[0, 0, 0, 0, 0] : f32 from vector<1x1x1x1x1xf32>
    %190 = arith.addf %167, %189 : f32
    %191 = vector.extract_strided_slice %8 {offsets = [0, 0, 0, 1], sizes = [2, 1, 1, 14], strides = [1, 1, 1, 1]} : vector<2x1x1x16xf32> to vector<2x1x1x14xf32>
    %192 = vector.extract_strided_slice %22 {offsets = [0, 0, 0, 1], sizes = [2, 1, 1, 14], strides = [1, 1, 1, 1]} : vector<2x1x1x16xf32> to vector<2x1x1x14xf32>
    %193 = vector.extract_strided_slice %12 {offsets = [0, 0, 15, 0], sizes = [2, 1, 1, 14], strides = [1, 1, 1, 1]} : vector<2x1x16x14xf32> to vector<2x1x1x14xf32>
    %194 = vector.extract_strided_slice %26 {offsets = [0, 0, 15, 0], sizes = [2, 1, 1, 14], strides = [1, 1, 1, 1]} : vector<2x1x16x14xf32> to vector<2x1x1x14xf32>
    %195 = arith.mulf %191, %191 : vector<2x1x1x14xf32>
    %196 = arith.mulf %193, %193 : vector<2x1x1x14xf32>
    %197 = arith.addf %195, %196 : vector<2x1x1x14xf32>
    %cst_32 = arith.constant 9.99999997E-7 : f32
    %198 = vector.broadcast %cst_32 : f32 to vector<2x1x1x14xf32>
    %199 = arith.addf %197, %198 : vector<2x1x1x14xf32>
    %200 = math.sqrt %199 : vector<2x1x1x14xf32>
    %201 = arith.mulf %192, %192 : vector<2x1x1x14xf32>
    %202 = arith.mulf %194, %194 : vector<2x1x1x14xf32>
    %203 = arith.addf %201, %202 : vector<2x1x1x14xf32>
    %cst_33 = arith.constant 9.99999997E-7 : f32
    %204 = vector.broadcast %cst_33 : f32 to vector<2x1x1x14xf32>
    %205 = arith.addf %203, %204 : vector<2x1x1x14xf32>
    %206 = math.sqrt %205 : vector<2x1x1x14xf32>
    %207 = arith.subf %200, %206 : vector<2x1x1x14xf32>
    %208 = math.absf %207 : vector<2x1x1x14xf32>
    %209 = vector.shape_cast %208 : vector<2x1x1x14xf32> to vector<1x2x1x1x14xf32>
    %cst_34 = arith.constant dense<0.000000e+00> : vector<1xf32>
    %210 = vector.multi_reduction <add>, %209, %cst_34 [1, 2, 3, 4] : vector<1x2x1x1x14xf32> to vector<1xf32>
    %211 = vector.shape_cast %210 : vector<1xf32> to vector<1x1x1x1x1xf32>
    %212 = vector.extract %211[0, 0, 0, 0, 0] : f32 from vector<1x1x1x1x1xf32>
    %213 = arith.addf %190, %212 : f32
    %214 = vector.extract_strided_slice %8 {offsets = [0, 0, 0, 15], sizes = [2, 1, 1, 1], strides = [1, 1, 1, 1]} : vector<2x1x1x16xf32> to vector<2x1x1x1xf32>
    %215 = vector.extract_strided_slice %22 {offsets = [0, 0, 0, 15], sizes = [2, 1, 1, 1], strides = [1, 1, 1, 1]} : vector<2x1x1x16xf32> to vector<2x1x1x1xf32>
    %216 = vector.extract_strided_slice %15 {offsets = [0, 0, 15, 0], sizes = [2, 1, 1, 1], strides = [1, 1, 1, 1]} : vector<2x1x16x1xf32> to vector<2x1x1x1xf32>
    %217 = vector.extract_strided_slice %29 {offsets = [0, 0, 15, 0], sizes = [2, 1, 1, 1], strides = [1, 1, 1, 1]} : vector<2x1x16x1xf32> to vector<2x1x1x1xf32>
    %218 = arith.mulf %214, %214 : vector<2x1x1x1xf32>
    %219 = arith.mulf %216, %216 : vector<2x1x1x1xf32>
    %220 = arith.addf %218, %219 : vector<2x1x1x1xf32>
    %cst_35 = arith.constant 9.99999997E-7 : f32
    %221 = vector.broadcast %cst_35 : f32 to vector<2x1x1x1xf32>
    %222 = arith.addf %220, %221 : vector<2x1x1x1xf32>
    %223 = math.sqrt %222 : vector<2x1x1x1xf32>
    %224 = arith.mulf %215, %215 : vector<2x1x1x1xf32>
    %225 = arith.mulf %217, %217 : vector<2x1x1x1xf32>
    %226 = arith.addf %224, %225 : vector<2x1x1x1xf32>
    %cst_36 = arith.constant 9.99999997E-7 : f32
    %227 = vector.broadcast %cst_36 : f32 to vector<2x1x1x1xf32>
    %228 = arith.addf %226, %227 : vector<2x1x1x1xf32>
    %229 = math.sqrt %228 : vector<2x1x1x1xf32>
    %230 = arith.subf %223, %229 : vector<2x1x1x1xf32>
    %231 = math.absf %230 : vector<2x1x1x1xf32>
    %232 = vector.shape_cast %231 : vector<2x1x1x1xf32> to vector<1x2x1x1x1xf32>
    %cst_37 = arith.constant dense<0.000000e+00> : vector<1xf32>
    %233 = vector.multi_reduction <add>, %232, %cst_37 [1, 2, 3, 4] : vector<1x2x1x1x1xf32> to vector<1xf32>
    %234 = vector.shape_cast %233 : vector<1xf32> to vector<1x1x1x1x1xf32>
    %235 = vector.extract %234[0, 0, 0, 0, 0] : f32 from vector<1x1x1x1x1xf32>
    %236 = arith.addf %213, %235 : f32
    %c0_38 = arith.constant 0 : index
    %c0_39 = arith.constant 0 : index
    %237 = memref.load %arg3[%c0_38, %c0_39] : memref<1x1xf32, #tpu.memory_space<smem>>
    memref.store %236, %arg3[%c0_38, %c0_39] : memref<1x1xf32, #tpu.memory_space<smem>>
    return
  }
  func.func @transform_0(%arg0: i32) -> (i32, i32, i32, i32) {
    %c0_i32 = arith.constant 0 : i32
    %c0_i32_0 = arith.constant 0 : i32
    %c0_i32_1 = arith.constant 0 : i32
    %c0_i32_2 = arith.constant 0 : i32
    return %arg0, %c0_i32, %c0_i32_0, %c0_i32_1 : i32, i32, i32, i32
  }
  func.func @transform_1(%arg0: i32) -> (i32, i32, i32, i32) {
    %c0_i32 = arith.constant 0 : i32
    %c0_i32_0 = arith.constant 0 : i32
    %c0_i32_1 = arith.constant 0 : i32
    %c0_i32_2 = arith.constant 0 : i32
    return %arg0, %c0_i32, %c0_i32_0, %c0_i32_1 : i32, i32, i32, i32
  }
  func.func @transform_2(%arg0: i32) -> (i32, i32) {
    %c0_i32 = arith.constant 0 : i32
    %c0_i32_0 = arith.constant 0 : i32
    return %arg0, %c0_i32 : i32, i32
  }
}

</mosaic_0001>

<llo_original>
// kernel: tpu_custom_call.1
$region0: #{tpu_custom_call.1}
  #allocation0 [shape = 'u32[]', space=smem, size = 0x4, offset = 0x4, fixed_abs, tag = 'smem constant byte address 0x4 - core index']
  #allocation1 [shape = 'u32[144,128]{1,0:T(1,128)}', space=vmem, size = 0x12000, scoped, tag = 'internal scratch']
  #allocation8 [shape = 's32[]', space=sflag, size = 0x4, offset = 0, fixed_abs, tag = 'sflag constant byte address 0x0 - dummy sync flag']
  #allocation10 [shape = 's32[]', space=sflag, size = 0x4, offset = 0, fixed_abs, tag = 'sflag constant byte address 0x0 - dummy sync flag']
  %s0 = inlined_call_operand.hbm [shape: f32[2,4,16,16], index: 0, kind: input, shape index: {}]
  %s1 = inlined_call_operand.hbm [shape: f32[2,4,16,16], index: 1, kind: input, shape index: {}]
  %s2 = inlined_call_operand.hbm [shape: f32[1,1], index: 2, kind: output, shape index: {}]
  %s3 = sld [smem:[#allocation0]]
  $region26: #{tpu_custom_call.1} parent=0
    _
  %s5 = ssub.s32 1, %s3
  %s6 = scalar_select 0, %s5, %s3
  $region1: #{tpu_custom_call.1} parent=0
    #allocation2 [shape = 'u8[16384]{0}', space=vmem, size = 0x4000, scoped, tag = 'input window, operand 0, single buffered']
    #allocation3 [shape = 's32[1]{0}', space=sflag, size = 0x4, scoped, tag = 'scoped memory for tpu_custom_call.1']
    #allocation4 [shape = 's32[1]{0}', space=sflag, size = 0x4, scoped, tag = 'scoped memory for tpu_custom_call.1']
    #allocation5 [shape = 'u8[16384]{0}', space=vmem, size = 0x4000, scoped, tag = 'input window, operand 1, single buffered']
    #allocation6 [shape = 's32[1]{0}', space=sflag, size = 0x4, scoped, tag = 'scoped memory for tpu_custom_call.1']
    #allocation7 [shape = 'u8[512]{0}', space=smem, size = 0x200, scoped, tag = 'output window, operand 0, single buffered']
    %7 = vsyncpa [#allocation3], 0
    %8 = vsyncpa [#allocation6], 0
    %9 = vsyncpa [#allocation4], 0
    // Predicated region
    $region2: #{tpu_custom_call.1} parent=1 // pred_check
      _
    $region3: #{tpu_custom_call.1} parent=1 // pred_check_branch
      %11 = sbr.rel (0) target = $region5
    $region4: #{tpu_custom_call.1} parent=1 // pred_region
      #allocation9 [shape = 'u32[6]{0}', space=smem, size = 0x18, scoped, tag = 'DMA stride descriptor']
      %s13 = ssub.s32 512, 512
      %14 = vsyncadd [#allocation3], %s13
      %s16 = sshll.u32 1, 14
      %s17 = sxor.u32 4294967295, %s16
      %s19 = sld [smem:[#allocation0]]
      %s20 = sadd.s32 2, %s19
      %s22 = sshll.u32 7, 26
      %s23 = sxor.u32 4294967295, %s22
      %s24 = sand.u32 0, %s23
      %s25 = sshll.u32 %s20, 26
      %s26 = sor.u32 %s24, %s25
      %s27 = sshll.u32 [#allocation2], 4
      %s28 = int_to_ptr.vmem [resolvable:$true] %s27
      %34 = sst [smem:[#allocation9]] 1024
      %s35 = scalar_lea.smem [#allocation9], 1
      %36 = sst [smem:[%s35]] 256
      %s37 = scalar_lea.smem [#allocation9], 2
      %38 = sst [smem:[%s37]] 2
      %s39 = scalar_lea.smem [#allocation9], 3
      %40 = sst [smem:[%s39]] 128
      %s41 = scalar_lea.smem [#allocation9], 4
      %42 = sst [smem:[%s41]] 128
      %s43 = scalar_lea.smem [#allocation9], 5
      %44 = sst [smem:[%s43]] 8
      %46 = dma.general %s0, 512, %s28, [#allocation3], [#allocation8], [#allocation9], %s26, 0
    $region5: #{tpu_custom_call.1} parent=1 // pred_fallthru
      _
    // Predicated region
    $region6: #{tpu_custom_call.1} parent=1 // pred_check
      _
    $region7: #{tpu_custom_call.1} parent=1 // pred_check_branch
      %48 = sbr.rel (0) target = $region9
    $region8: #{tpu_custom_call.1} parent=1 // pred_region
      #allocation11 [shape = 'u32[6]{0}', space=smem, size = 0x18, scoped, tag = 'DMA stride descriptor']
      %s50 = ssub.s32 512, 512
      %51 = vsyncadd [#allocation6], %s50
      %s53 = sshll.u32 1, 14
      %s54 = sxor.u32 4294967295, %s53
      %s56 = sld [smem:[#allocation0]]
      %s57 = sadd.s32 2, %s56
      %s59 = sshll.u32 7, 26
      %s60 = sxor.u32 4294967295, %s59
      %s61 = sand.u32 0, %s60
      %s62 = sshll.u32 %s57, 26
      %s63 = sor.u32 %s61, %s62
      %s64 = sshll.u32 [#allocation5], 4
      %s65 = int_to_ptr.vmem [resolvable:$true] %s64
      %71 = sst [smem:[#allocation11]] 1024
      %s72 = scalar_lea.smem [#allocation11], 1
      %73 = sst [smem:[%s72]] 256
      %s74 = scalar_lea.smem [#allocation11], 2
      %75 = sst [smem:[%s74]] 2
      %s76 = scalar_lea.smem [#allocation11], 3
      %77 = sst [smem:[%s76]] 128
      %s78 = scalar_lea.smem [#allocation11], 4
      %79 = sst [smem:[%s78]] 128
      %s80 = scalar_lea.smem [#allocation11], 5
      %81 = sst [smem:[%s80]] 8
      %83 = dma.general %s1, 512, %s65, [#allocation6], [#allocation10], [#allocation11], %s63, 0
    $region9: #{tpu_custom_call.1} parent=1 // pred_fallthru
      _
    // Predicated region
    $region10: #{tpu_custom_call.1} parent=1 // pred_check
      _
    $region11: #{tpu_custom_call.1} parent=1 // pred_check_branch
      %85 = sbr.rel (0) target = $region13
    $region12: #{tpu_custom_call.1} parent=1 // pred_region
      %86 = dma.done [#allocation3], 512
    $region13: #{tpu_custom_call.1} parent=1 // pred_fallthru
      _
    // Predicated region
    $region14: #{tpu_custom_call.1} parent=1 // pred_check
      _
    $region15: #{tpu_custom_call.1} parent=1 // pred_check_branch
      %88 = sbr.rel (0) target = $region17
    $region16: #{tpu_custom_call.1} parent=1 // pred_region
      %89 = dma.done [#allocation6], 512
    $region17: #{tpu_custom_call.1} parent=1 // pred_fallthru
      _
    %v90 = vld [vmem:[#allocation2] sm:$0xff]
    %v91 = vld [vmem:[#allocation2 + $0x8] sm:$0xff]
    %v92 = vld [vmem:[#allocation2 + $0x10] sm:$0xff]
    %v93 = vld [vmem:[#allocation2 + $0x18] sm:$0xff]
    %v94 = vld [vmem:[#allocation5] sm:$0xff]
    %v95 = vld [vmem:[#allocation5 + $0x8] sm:$0xff]
    %v96 = vld [vmem:[#allocation5 + $0x10] sm:$0xff]
    %v97 = vld [vmem:[#allocation5 + $0x18] sm:$0xff]
    %vm102 = vcmask 1041408
    %v103 = vrot.slane %v90, 6
    %v104 = vrot.slane %v91, 6
    %v105 = vsel %vm102, %v103, %v104
    %v106 = vrot.slane %v92, 6
    %v107 = vrot.slane %v93, 6
    %v108 = vsel %vm102, %v106, %v107
    %v113 = vsub.f32 %v90, %v103
    %v114 = vsub.f32 %v91, %v105
    %v115 = vsub.f32 %v92, %v106
    %v116 = vsub.f32 %v93, %v108
    %v117 = vsub.f32 0.0, %v91
    %v118 = vsub.f32 0.0, %v93
    %119 = vrot.lane.b32.xlu0 %v90, 2
    %v120 = vpop.permute.xlu0 %119
    %121 = vrot.lane.b32.xlu0 %v91, 2
    %v122 = vpop.permute.xlu0 %121
    %123 = vrot.lane.b32.xlu0 %v92, 2
    %v124 = vpop.permute.xlu0 %123
    %125 = vrot.lane.b32.xlu0 %v93, 2
    %v126 = vpop.permute.xlu0 %125
    %v131 = vsub.f32 %v90, %v120
    %v132 = vsub.f32 %v91, %v122
    %v133 = vsub.f32 %v92, %v124
    %v134 = vsub.f32 %v93, %v126
    %v135 = vsub.f32 0.0, %v90
    %v136 = vsub.f32 0.0, %v92
    %v141 = vrot.slane %v94, 6
    %v142 = vrot.slane %v95, 6
    %v143 = vsel %vm102, %v141, %v142
    %v144 = vrot.slane %v96, 6
    %v145 = vrot.slane %v97, 6
    %v146 = vsel %vm102, %v144, %v145
    %v151 = vsub.f32 %v94, %v141
    %v152 = vsub.f32 %v95, %v143
    %v153 = vsub.f32 %v96, %v144
    %v154 = vsub.f32 %v97, %v146
    %v155 = vsub.f32 0.0, %v95
    %v156 = vsub.f32 0.0, %v97
    %157 = vrot.lane.b32.xlu0 %v94, 2
    %v158 = vpop.permute.xlu0 %157
    %159 = vrot.lane.b32.xlu0 %v95, 2
    %v160 = vpop.permute.xlu0 %159
    %161 = vrot.lane.b32.xlu0 %v96, 2
    %v162 = vpop.permute.xlu0 %161
    %163 = vrot.lane.b32.xlu0 %v97, 2
    %v164 = vpop.permute.xlu0 %163
    %v169 = vsub.f32 %v94, %v158
    %v170 = vsub.f32 %v95, %v160
    %v171 = vsub.f32 %v96, %v162
    %v172 = vsub.f32 %v97, %v164
    %v173 = vsub.f32 0.0, %v94
    %v174 = vsub.f32 0.0, %v96
    %v175 = vmul.f32 %v90, %v90
    %v176 = vmul.f32 %v92, %v92
    %v179 = vrot.slane %v175, 7
    %v180 = vrot.slane %v176, 7
    %181 = vrot.lane.b32.xlu0 %v179, 127
    %v182 = vpop.permute.xlu0 %181
    %183 = vrot.lane.b32.xlu0 %v180, 127
    %v184 = vpop.permute.xlu0 %183
    %v187 = vadd.f32 %v175, %v182
    %v188 = vadd.f32 %v176, %v184
    %v189 = vadd.f32 %v187, 1e-06
    %v190 = vadd.f32 %v188, 1e-06
    %v191 = vrsqrt.pop %v189
    %v192 = vmul.f32 %v189, %v191
    %vm193 = vcmp.eq.f32.partialorder %v189, inf
    %v194 = vsel %vm193, %v189, %v192
    %vm195 = vcmp.eq.f32.partialorder %v189, 0.0
    %v196 = vand.u32 %v189, 2147483648
    %v197 = vsel %vm195, %v196, %v194
    %v198 = vrsqrt.pop %v190
    %v199 = vmul.f32 %v190, %v198
    %vm200 = vcmp.eq.f32.partialorder %v190, inf
    %v201 = vsel %vm200, %v190, %v199
    %vm202 = vcmp.eq.f32.partialorder %v190, 0.0
    %v203 = vand.u32 %v190, 2147483648
    %v204 = vsel %vm202, %v203, %v201
    %v205 = vmul.f32 %v94, %v94
    %v206 = vmul.f32 %v96, %v96
    %v209 = vrot.slane %v205, 7
    %v210 = vrot.slane %v206, 7
    %211 = vrot.lane.b32.xlu0 %v209, 127
    %v212 = vpop.permute.xlu0 %211
    %213 = vrot.lane.b32.xlu0 %v210, 127
    %v214 = vpop.permute.xlu0 %213
    %v217 = vadd.f32 %v205, %v212
    %v218 = vadd.f32 %v206, %v214
    %v219 = vadd.f32 %v217, 1e-06
    %v220 = vadd.f32 %v218, 1e-06
    %v221 = vrsqrt.pop %v219
    %v222 = vmul.f32 %v219, %v221
    %vm223 = vcmp.eq.f32.partialorder %v219, inf
    %v224 = vsel %vm223, %v219, %v222
    %vm225 = vcmp.eq.f32.partialorder %v219, 0.0
    %v226 = vand.u32 %v219, 2147483648
    %v227 = vsel %vm225, %v226, %v224
    %v228 = vrsqrt.pop %v220
    %v229 = vmul.f32 %v220, %v228
    %vm230 = vcmp.eq.f32.partialorder %v220, inf
    %v231 = vsel %vm230, %v220, %v229
    %vm232 = vcmp.eq.f32.partialorder %v220, 0.0
    %v233 = vand.u32 %v220, 2147483648
    %v234 = vsel %vm232, %v233, %v231
    %v235 = vsub.f32 %v197, %v227
    %v236 = vsub.f32 %v204, %v234
    %v237 = vand.u32 2147483647, %v235
    %v238 = vand.u32 2147483647, %v236
    %v241 = vrot.slane %v237, 1
    %v242 = vrot.slane %v238, 1
    %vm245 = vcmask 0
    %v246 = vsel %vm245, %v241, 0.0
    %v247 = vsel %vm245, %v242, 0.0
    %v248 = vadd.f32 %v246, %v247
    %249 = vadd.xlane.f32.xlu0 %v248
    %v250 = vpop.xlane.xlu0 %249
    %v251 = vrot.slane %v250, 4
    %v252 = vadd.f32 %v250, %v251
    %v253 = vrot.slane %v252, 2
    %v254 = vadd.f32 %v252, %v253
    %v255 = vrot.slane %v254, 1
    %v256 = vadd.f32 %v254, %v255
    %s257 = vtos %v256
    %s258 = sadd.f32 %s257, 0.0
    %v259 = vmul.f32 %v131, %v131
    %v260 = vmul.f32 %v133, %v133
    %v263 = vrot.slane %v259, 7
    %v264 = vrot.slane %v260, 7
    %265 = vrot.lane.b32.xlu0 %v263, 127
    %v266 = vpop.permute.xlu0 %265
    %267 = vrot.lane.b32.xlu0 %v264, 127
    %v268 = vpop.permute.xlu0 %267
    %v271 = vadd.f32 %v175, %v266
    %v272 = vadd.f32 %v176, %v268
    %v273 = vadd.f32 %v271, 1e-06
    %v274 = vadd.f32 %v272, 1e-06
    %v275 = vrsqrt.pop %v273
    %v276 = vmul.f32 %v273, %v275
    %vm277 = vcmp.eq.f32.partialorder %v273, inf
    %v278 = vsel %vm277, %v273, %v276
    %vm279 = vcmp.eq.f32.partialorder %v273, 0.0
    %v280 = vand.u32 %v273, 2147483648
    %v281 = vsel %vm279, %v280, %v278
    %v282 = vrsqrt.pop %v274
    %v283 = vmul.f32 %v274, %v282
    %vm284 = vcmp.eq.f32.partialorder %v274, inf
    %v285 = vsel %vm284, %v274, %v283
    %vm286 = vcmp.eq.f32.partialorder %v274, 0.0
    %v287 = vand.u32 %v274, 2147483648
    %v288 = vsel %vm286, %v287, %v285
    %v289 = vmul.f32 %v169, %v169
    %v290 = vmul.f32 %v171, %v171
    %v293 = vrot.slane %v289, 7
    %v294 = vrot.slane %v290, 7
    %295 = vrot.lane.b32.xlu0 %v293, 127
    %v296 = vpop.permute.xlu0 %295
    %297 = vrot.lane.b32.xlu0 %v294, 127
    %v298 = vpop.permute.xlu0 %297
    %v301 = vadd.f32 %v205, %v296
    %v302 = vadd.f32 %v206, %v298
    %v303 = vadd.f32 %v301, 1e-06
    %v304 = vadd.f32 %v302, 1e-06
    %v305 = vrsqrt.pop %v303
    %v306 = vmul.f32 %v303, %v305
    %vm307 = vcmp.eq.f32.partialorder %v303, inf
    %v308 = vsel %vm307, %v303, %v306
    %vm309 = vcmp.eq.f32.partialorder %v303, 0.0
    %v310 = vand.u32 %v303, 2147483648
    %v311 = vsel %vm309, %v310, %v308
    %v312 = vrsqrt.pop %v304
    %v313 = vmul.f32 %v304, %v312
    %vm314 = vcmp.eq.f32.partialorder %v304, inf
    %v315 = vsel %vm314, %v304, %v313
    %vm316 = vcmp.eq.f32.partialorder %v304, 0.0
    %v317 = vand.u32 %v304, 2147483648
    %v318 = vsel %vm316, %v317, %v315
    %v319 = vsub.f32 %v281, %v311
    %v320 = vsub.f32 %v288, %v318
    %v321 = vand.u32 2147483647, %v319
    %v322 = vand.u32 2147483647, %v320
    %v325 = vrot.slane %v321, 1
    %v326 = vrot.slane %v322, 1
    %327 = vrot.lane.b32.xlu0 %v325, 127
    %v328 = vpop.permute.xlu0 %327
    %329 = vrot.lane.b32.xlu0 %v326, 127
    %v330 = vpop.permute.xlu0 %329
    %vm333 = vcmask 106496
    %v334 = vsel %vm333, %v328, 0.0
    %v335 = vsel %vm333, %v330, 0.0
    %v336 = vadd.f32 %v334, %v335
    %337 = vadd.xlane.f32.xlu0 %v336
    %v338 = vpop.xlane.xlu0 %337
    %v339 = vrot.slane %v338, 4
    %v340 = vadd.f32 %v338, %v339
    %v341 = vrot.slane %v340, 2
    %v342 = vadd.f32 %v340, %v341
    %v343 = vrot.slane %v342, 1
    %v344 = vadd.f32 %v342, %v343
    %s345 = vtos %v344
    %s346 = sadd.f32 %s258, %s345
    %v347 = vmul.f32 %v135, %v135
    %v348 = vmul.f32 %v136, %v136
    %v351 = vrot.slane %v347, 7
    %v352 = vrot.slane %v348, 7
    %353 = vrot.lane.b32.xlu0 %v351, 1
    %v354 = vpop.permute.xlu0 %353
    %355 = vrot.lane.b32.xlu0 %v352, 1
    %v356 = vpop.permute.xlu0 %355
    %v359 = vadd.f32 %v175, %v354
    %v360 = vadd.f32 %v176, %v356
    %v361 = vadd.f32 %v359, 1e-06
    %v362 = vadd.f32 %v360, 1e-06
    %v363 = vrsqrt.pop %v361
    %v364 = vmul.f32 %v361, %v363
    %vm365 = vcmp.eq.f32.partialorder %v361, inf
    %v366 = vsel %vm365, %v361, %v364
    %vm367 = vcmp.eq.f32.partialorder %v361, 0.0
    %v368 = vand.u32 %v361, 2147483648
    %v369 = vsel %vm367, %v368, %v366
    %v370 = vrsqrt.pop %v362
    %v371 = vmul.f32 %v362, %v370
    %vm372 = vcmp.eq.f32.partialorder %v362, inf
    %v373 = vsel %vm372, %v362, %v371
    %vm374 = vcmp.eq.f32.partialorder %v362, 0.0
    %v375 = vand.u32 %v362, 2147483648
    %v376 = vsel %vm374, %v375, %v373
    %v377 = vmul.f32 %v173, %v173
    %v378 = vmul.f32 %v174, %v174
    %v381 = vrot.slane %v377, 7
    %v382 = vrot.slane %v378, 7
    %383 = vrot.lane.b32.xlu0 %v381, 1
    %v384 = vpop.permute.xlu0 %383
    %385 = vrot.lane.b32.xlu0 %v382, 1
    %v386 = vpop.permute.xlu0 %385
    %v389 = vadd.f32 %v205, %v384
    %v390 = vadd.f32 %v206, %v386
    %v391 = vadd.f32 %v389, 1e-06
    %v392 = vadd.f32 %v390, 1e-06
    %v393 = vrsqrt.pop %v391
    %v394 = vmul.f32 %v391, %v393
    %vm395 = vcmp.eq.f32.partialorder %v391, inf
    %v396 = vsel %vm395, %v391, %v394
    %vm397 = vcmp.eq.f32.partialorder %v391, 0.0
    %v398 = vand.u32 %v391, 2147483648
    %v399 = vsel %vm397, %v398, %v396
    %v400 = vrsqrt.pop %v392
    %v401 = vmul.f32 %v392, %v400
    %vm402 = vcmp.eq.f32.partialorder %v392, inf
    %v403 = vsel %vm402, %v392, %v401
    %vm404 = vcmp.eq.f32.partialorder %v392, 0.0
    %v405 = vand.u32 %v392, 2147483648
    %v406 = vsel %vm404, %v405, %v403
    %v407 = vsub.f32 %v369, %v399
    %v408 = vsub.f32 %v376, %v406
    %v409 = vand.u32 2147483647, %v407
    %v410 = vand.u32 2147483647, %v408
    %v413 = vrot.slane %v409, 1
    %v414 = vrot.slane %v410, 1
    %415 = vrot.lane.b32.xlu0 %v413, 113
    %v416 = vpop.permute.xlu0 %415
    %417 = vrot.lane.b32.xlu0 %v414, 113
    %v418 = vpop.permute.xlu0 %417
    %v421 = vsel %vm245, %v416, 0.0
    %v422 = vsel %vm245, %v418, 0.0
    %v423 = vadd.f32 %v421, %v422
    %424 = vadd.xlane.f32.xlu0 %v423
    %v425 = vpop.xlane.xlu0 %424
    %v426 = vrot.slane %v425, 4
    %v427 = vadd.f32 %v425, %v426
    %v428 = vrot.slane %v427, 2
    %v429 = vadd.f32 %v427, %v428
    %v430 = vrot.slane %v429, 1
    %v431 = vadd.f32 %v429, %v430
    %s432 = vtos %v431
    %s433 = sadd.f32 %s346, %s432
    %v434 = vmul.f32 %v113, %v113
    %v435 = vmul.f32 %v114, %v114
    %v436 = vmul.f32 %v115, %v115
    %v437 = vmul.f32 %v116, %v116
    %v438 = vmul.f32 %v91, %v91
    %v439 = vmul.f32 %v93, %v93
    %vm442 = vcmask 1040384
    %v443 = vrot.slane %v438, 7
    %v444 = vsel %vm442, %v179, %v443
    %v445 = vrot.slane %v439, 7
    %v446 = vsel %vm442, %v180, %v445
    %447 = vrot.lane.b32.xlu0 %v444, 127
    %v448 = vpop.permute.xlu0 %447
    %449 = vrot.lane.b32.xlu0 %v446, 127
    %v450 = vpop.permute.xlu0 %449
    %v453 = vadd.f32 %v434, %v182
    %v454 = vadd.f32 %v435, %v448
    %v455 = vadd.f32 %v436, %v184
    %v456 = vadd.f32 %v437, %v450
    %v457 = vadd.f32 %v453, 1e-06
    %v458 = vadd.f32 %v454, 1e-06
    %v459 = vadd.f32 %v455, 1e-06
    %v460 = vadd.f32 %v456, 1e-06
    %v461 = vrsqrt.pop %v457
    %v462 = vmul.f32 %v457, %v461
    %vm463 = vcmp.eq.f32.partialorder %v457, inf
    %v464 = vsel %vm463, %v457, %v462
    %vm465 = vcmp.eq.f32.partialorder %v457, 0.0
    %v466 = vand.u32 %v457, 2147483648
    %v467 = vsel %vm465, %v466, %v464
    %v468 = vrsqrt.pop %v458
    %v469 = vmul.f32 %v458, %v468
    %vm470 = vcmp.eq.f32.partialorder %v458, inf
    %v471 = vsel %vm470, %v458, %v469
    %vm472 = vcmp.eq.f32.partialorder %v458, 0.0
    %v473 = vand.u32 %v458, 2147483648
    %v474 = vsel %vm472, %v473, %v471
    %v475 = vrsqrt.pop %v459
    %v476 = vmul.f32 %v459, %v475
    %vm477 = vcmp.eq.f32.partialorder %v459, inf
    %v478 = vsel %vm477, %v459, %v476
    %vm479 = vcmp.eq.f32.partialorder %v459, 0.0
    %v480 = vand.u32 %v459, 2147483648
    %v481 = vsel %vm479, %v480, %v478
    %v482 = vrsqrt.pop %v460
    %v483 = vmul.f32 %v460, %v482
    %vm484 = vcmp.eq.f32.partialorder %v460, inf
    %v485 = vsel %vm484, %v460, %v483
    %vm486 = vcmp.eq.f32.partialorder %v460, 0.0
    %v487 = vand.u32 %v460, 2147483648
    %v488 = vsel %vm486, %v487, %v485
    %v489 = vmul.f32 %v151, %v151
    %v490 = vmul.f32 %v152, %v152
    %v491 = vmul.f32 %v153, %v153
    %v492 = vmul.f32 %v154, %v154
    %v493 = vmul.f32 %v95, %v95
    %v494 = vmul.f32 %v97, %v97
    %v497 = vrot.slane %v493, 7
    %v498 = vsel %vm442, %v209, %v497
    %v499 = vrot.slane %v494, 7
    %v500 = vsel %vm442, %v210, %v499
    %501 = vrot.lane.b32.xlu0 %v498, 127
    %v502 = vpop.permute.xlu0 %501
    %503 = vrot.lane.b32.xlu0 %v500, 127
    %v504 = vpop.permute.xlu0 %503
    %v507 = vadd.f32 %v489, %v212
    %v508 = vadd.f32 %v490, %v502
    %v509 = vadd.f32 %v491, %v214
    %v510 = vadd.f32 %v492, %v504
    %v511 = vadd.f32 %v507, 1e-06
    %v512 = vadd.f32 %v508, 1e-06
    %v513 = vadd.f32 %v509, 1e-06
    %v514 = vadd.f32 %v510, 1e-06
    %v515 = vrsqrt.pop %v511
    %v516 = vmul.f32 %v511, %v515
    %vm517 = vcmp.eq.f32.partialorder %v511, inf
    %v518 = vsel %vm517, %v511, %v516
    %vm519 = vcmp.eq.f32.partialorder %v511, 0.0
    %v520 = vand.u32 %v511, 2147483648
    %v521 = vsel %vm519, %v520, %v518
    %v522 = vrsqrt.pop %v512
    %v523 = vmul.f32 %v512, %v522
    %vm524 = vcmp.eq.f32.partialorder %v512, inf
    %v525 = vsel %vm524, %v512, %v523
    %vm526 = vcmp.eq.f32.partialorder %v512, 0.0
    %v527 = vand.u32 %v512, 2147483648
    %v528 = vsel %vm526, %v527, %v525
    %v529 = vrsqrt.pop %v513
    %v530 = vmul.f32 %v513, %v529
    %vm531 = vcmp.eq.f32.partialorder %v513, inf
    %v532 = vsel %vm531, %v513, %v530
    %vm533 = vcmp.eq.f32.partialorder %v513, 0.0
    %v534 = vand.u32 %v513, 2147483648
    %v535 = vsel %vm533, %v534, %v532
    %v536 = vrsqrt.pop %v514
    %v537 = vmul.f32 %v514, %v536
    %vm538 = vcmp.eq.f32.partialorder %v514, inf
    %v539 = vsel %vm538, %v514, %v537
    %vm540 = vcmp.eq.f32.partialorder %v514, 0.0
    %v541 = vand.u32 %v514, 2147483648
    %v542 = vsel %vm540, %v541, %v539
    %v543 = vsub.f32 %v467, %v521
    %v544 = vsub.f32 %v474, %v528
    %v545 = vsub.f32 %v481, %v535
    %v546 = vsub.f32 %v488, %v542
    %v547 = vand.u32 2147483647, %v543
    %v548 = vand.u32 2147483647, %v544
    %v549 = vand.u32 2147483647, %v545
    %v550 = vand.u32 2147483647, %v546
    %vm555 = vcmask 1045504
    %v556 = vrot.slane %v547, 2
    %v557 = vrot.slane %v548, 2
    %v558 = vsel %vm555, %v556, %v557
    %v559 = vrot.slane %v549, 2
    %v560 = vrot.slane %v550, 2
    %v561 = vsel %vm555, %v559, %v560
    %vm566 = vcmask 7168
    %v567 = vsel %vm566, %v558, 0.0
    %vm568 = vcmask 5120
    %v569 = vsel %vm568, %v557, 0.0
    %v570 = vadd.f32 %v567, %v569
    %v571 = vsel %vm566, %v561, 0.0
    %v572 = vadd.f32 %v570, %v571
    %v573 = vsel %vm568, %v560, 0.0
    %v574 = vadd.f32 %v572, %v573
    %575 = vadd.xlane.f32.xlu0 %v574
    %v576 = vpop.xlane.xlu0 %575
    %v577 = vrot.slane %v576, 4
    %v578 = vadd.f32 %v576, %v577
    %v579 = vrot.slane %v578, 2
    %v580 = vadd.f32 %v578, %v579
    %v581 = vrot.slane %v580, 1
    %v582 = vadd.f32 %v580, %v581
    %s583 = vtos %v582
    %s584 = sadd.f32 %s433, %s583
    %v585 = vmul.f32 %v132, %v132
    %v586 = vmul.f32 %v134, %v134
    %v589 = vrot.slane %v585, 7
    %v590 = vsel %vm442, %v263, %v589
    %v591 = vrot.slane %v586, 7
    %v592 = vsel %vm442, %v264, %v591
    %593 = vrot.lane.b32.xlu0 %v590, 127
    %v594 = vpop.permute.xlu0 %593
    %595 = vrot.lane.b32.xlu0 %v592, 127
    %v596 = vpop.permute.xlu0 %595
    %v599 = vadd.f32 %v434, %v266
    %v600 = vadd.f32 %v435, %v594
    %v601 = vadd.f32 %v436, %v268
    %v602 = vadd.f32 %v437, %v596
    %v603 = vadd.f32 %v599, 1e-06
    %v604 = vadd.f32 %v600, 1e-06
    %v605 = vadd.f32 %v601, 1e-06
    %v606 = vadd.f32 %v602, 1e-06
    %v607 = vrsqrt.pop %v603
    %v608 = vmul.f32 %v603, %v607
    %vm609 = vcmp.eq.f32.partialorder %v603, inf
    %v610 = vsel %vm609, %v603, %v608
    %vm611 = vcmp.eq.f32.partialorder %v603, 0.0
    %v612 = vand.u32 %v603, 2147483648
    %v613 = vsel %vm611, %v612, %v610
    %v614 = vrsqrt.pop %v604
    %v615 = vmul.f32 %v604, %v614
    %vm616 = vcmp.eq.f32.partialorder %v604, inf
    %v617 = vsel %vm616, %v604, %v615
    %vm618 = vcmp.eq.f32.partialorder %v604, 0.0
    %v619 = vand.u32 %v604, 2147483648
    %v620 = vsel %vm618, %v619, %v617
    %v621 = vrsqrt.pop %v605
    %v622 = vmul.f32 %v605, %v621
    %vm623 = vcmp.eq.f32.partialorder %v605, inf
    %v624 = vsel %vm623, %v605, %v622
    %vm625 = vcmp.eq.f32.partialorder %v605, 0.0
    %v626 = vand.u32 %v605, 2147483648
    %v627 = vsel %vm625, %v626, %v624
    %v628 = vrsqrt.pop %v606
    %v629 = vmul.f32 %v606, %v628
    %vm630 = vcmp.eq.f32.partialorder %v606, inf
    %v631 = vsel %vm630, %v606, %v629
    %vm632 = vcmp.eq.f32.partialorder %v606, 0.0
    %v633 = vand.u32 %v606, 2147483648
    %v634 = vsel %vm632, %v633, %v631
    %v635 = vmul.f32 %v170, %v170
    %v636 = vmul.f32 %v172, %v172
    %v639 = vrot.slane %v635, 7
    %v640 = vsel %vm442, %v293, %v639
    %v641 = vrot.slane %v636, 7
    %v642 = vsel %vm442, %v294, %v641
    %643 = vrot.lane.b32.xlu0 %v640, 127
    %v644 = vpop.permute.xlu0 %643
    %645 = vrot.lane.b32.xlu0 %v642, 127
    %v646 = vpop.permute.xlu0 %645
    %v649 = vadd.f32 %v489, %v296
    %v650 = vadd.f32 %v490, %v644
    %v651 = vadd.f32 %v491, %v298
    %v652 = vadd.f32 %v492, %v646
    %v653 = vadd.f32 %v649, 1e-06
    %v654 = vadd.f32 %v650, 1e-06
    %v655 = vadd.f32 %v651, 1e-06
    %v656 = vadd.f32 %v652, 1e-06
    %v657 = vrsqrt.pop %v653
    %v658 = vmul.f32 %v653, %v657
    %vm659 = vcmp.eq.f32.partialorder %v653, inf
    %v660 = vsel %vm659, %v653, %v658
    %vm661 = vcmp.eq.f32.partialorder %v653, 0.0
    %v662 = vand.u32 %v653, 2147483648
    %v663 = vsel %vm661, %v662, %v660
    %v664 = vrsqrt.pop %v654
    %v665 = vmul.f32 %v654, %v664
    %vm666 = vcmp.eq.f32.partialorder %v654, inf
    %v667 = vsel %vm666, %v654, %v665
    %vm668 = vcmp.eq.f32.partialorder %v654, 0.0
    %v669 = vand.u32 %v654, 2147483648
    %v670 = vsel %vm668, %v669, %v667
    %v671 = vrsqrt.pop %v655
    %v672 = vmul.f32 %v655, %v671
    %vm673 = vcmp.eq.f32.partialorder %v655, inf
    %v674 = vsel %vm673, %v655, %v672
    %vm675 = vcmp.eq.f32.partialorder %v655, 0.0
    %v676 = vand.u32 %v655, 2147483648
    %v677 = vsel %vm675, %v676, %v674
    %v678 = vrsqrt.pop %v656
    %v679 = vmul.f32 %v656, %v678
    %vm680 = vcmp.eq.f32.partialorder %v656, inf
    %v681 = vsel %vm680, %v656, %v679
    %vm682 = vcmp.eq.f32.partialorder %v656, 0.0
    %v683 = vand.u32 %v656, 2147483648
    %v684 = vsel %vm682, %v683, %v681
    %v685 = vsub.f32 %v613, %v663
    %v686 = vsub.f32 %v620, %v670
    %v687 = vsub.f32 %v627, %v677
    %v688 = vsub.f32 %v634, %v684
    %v689 = vand.u32 2147483647, %v685
    %v690 = vand.u32 2147483647, %v686
    %v691 = vand.u32 2147483647, %v687
    %v692 = vand.u32 2147483647, %v688
    %v697 = vrot.slane %v689, 2
    %v698 = vrot.slane %v690, 2
    %v699 = vsel %vm555, %v697, %v698
    %v700 = vrot.slane %v691, 2
    %v701 = vrot.slane %v692, 2
    %v702 = vsel %vm555, %v700, %v701
    %703 = vrot.lane.b32.xlu0 %v699, 127
    %v704 = vpop.permute.xlu0 %703
    %705 = vrot.lane.b32.xlu0 %v698, 127
    %v706 = vpop.permute.xlu0 %705
    %707 = vrot.lane.b32.xlu0 %v702, 127
    %v708 = vpop.permute.xlu0 %707
    %709 = vrot.lane.b32.xlu0 %v701, 127
    %v710 = vpop.permute.xlu0 %709
    %vm715 = vcmask 113664
    %v716 = vsel %vm715, %v704, 0.0
    %vm717 = vcmask 111616
    %v718 = vsel %vm717, %v706, 0.0
    %v719 = vadd.f32 %v716, %v718
    %v720 = vsel %vm715, %v708, 0.0
    %v721 = vadd.f32 %v719, %v720
    %v722 = vsel %vm717, %v710, 0.0
    %v723 = vadd.f32 %v721, %v722
    %724 = vadd.xlane.f32.xlu0 %v723
    %v725 = vpop.xlane.xlu0 %724
    %v726 = vrot.slane %v725, 4
    %v727 = vadd.f32 %v725, %v726
    %v728 = vrot.slane %v727, 2
    %v729 = vadd.f32 %v727, %v728
    %v730 = vrot.slane %v729, 1
    %v731 = vadd.f32 %v729, %v730
    %s732 = vtos %v731
    %s733 = sadd.f32 %s584, %s732
    %v734 = vmul.f32 %v117, %v117
    %v735 = vmul.f32 %v118, %v118
    %v738 = vrot.slane %v734, 7
    %v739 = vsel %vm442, %v351, %v738
    %v740 = vrot.slane %v735, 7
    %v741 = vsel %vm442, %v352, %v740
    %742 = vrot.lane.b32.xlu0 %v739, 1
    %v743 = vpop.permute.xlu0 %742
    %744 = vrot.lane.b32.xlu0 %v741, 1
    %v745 = vpop.permute.xlu0 %744
    %v748 = vadd.f32 %v434, %v354
    %v749 = vadd.f32 %v435, %v743
    %v750 = vadd.f32 %v436, %v356
    %v751 = vadd.f32 %v437, %v745
    %v752 = vadd.f32 %v748, 1e-06
    %v753 = vadd.f32 %v749, 1e-06
    %v754 = vadd.f32 %v750, 1e-06
    %v755 = vadd.f32 %v751, 1e-06
    %v756 = vrsqrt.pop %v752
    %v757 = vmul.f32 %v752, %v756
    %vm758 = vcmp.eq.f32.partialorder %v752, inf
    %v759 = vsel %vm758, %v752, %v757
    %vm760 = vcmp.eq.f32.partialorder %v752, 0.0
    %v761 = vand.u32 %v752, 2147483648
    %v762 = vsel %vm760, %v761, %v759
    %v763 = vrsqrt.pop %v753
    %v764 = vmul.f32 %v753, %v763
    %vm765 = vcmp.eq.f32.partialorder %v753, inf
    %v766 = vsel %vm765, %v753, %v764
    %vm767 = vcmp.eq.f32.partialorder %v753, 0.0
    %v768 = vand.u32 %v753, 2147483648
    %v769 = vsel %vm767, %v768, %v766
    %v770 = vrsqrt.pop %v754
    %v771 = vmul.f32 %v754, %v770
    %vm772 = vcmp.eq.f32.partialorder %v754, inf
    %v773 = vsel %vm772, %v754, %v771
    %vm774 = vcmp.eq.f32.partialorder %v754, 0.0
    %v775 = vand.u32 %v754, 2147483648
    %v776 = vsel %vm774, %v775, %v773
    %v777 = vrsqrt.pop %v755
    %v778 = vmul.f32 %v755, %v777
    %vm779 = vcmp.eq.f32.partialorder %v755, inf
    %v780 = vsel %vm779, %v755, %v778
    %vm781 = vcmp.eq.f32.partialorder %v755, 0.0
    %v782 = vand.u32 %v755, 2147483648
    %v783 = vsel %vm781, %v782, %v780
    %v784 = vmul.f32 %v155, %v155
    %v785 = vmul.f32 %v156, %v156
    %v788 = vrot.slane %v784, 7
    %v789 = vsel %vm442, %v381, %v788
    %v790 = vrot.slane %v785, 7
    %v791 = vsel %vm442, %v382, %v790
    %792 = vrot.lane.b32.xlu0 %v789, 1
    %v793 = vpop.permute.xlu0 %792
    %794 = vrot.lane.b32.xlu0 %v791, 1
    %v795 = vpop.permute.xlu0 %794
    %v798 = vadd.f32 %v489, %v384
    %v799 = vadd.f32 %v490, %v793
    %v800 = vadd.f32 %v491, %v386
    %v801 = vadd.f32 %v492, %v795
    %v802 = vadd.f32 %v798, 1e-06
    %v803 = vadd.f32 %v799, 1e-06
    %v804 = vadd.f32 %v800, 1e-06
    %v805 = vadd.f32 %v801, 1e-06
    %v806 = vrsqrt.pop %v802
    %v807 = vmul.f32 %v802, %v806
    %vm808 = vcmp.eq.f32.partialorder %v802, inf
    %v809 = vsel %vm808, %v802, %v807
    %vm810 = vcmp.eq.f32.partialorder %v802, 0.0
    %v811 = vand.u32 %v802, 2147483648
    %v812 = vsel %vm810, %v811, %v809
    %v813 = vrsqrt.pop %v803
    %v814 = vmul.f32 %v803, %v813
    %vm815 = vcmp.eq.f32.partialorder %v803, inf
    %v816 = vsel %vm815, %v803, %v814
    %vm817 = vcmp.eq.f32.partialorder %v803, 0.0
    %v818 = vand.u32 %v803, 2147483648
    %v819 = vsel %vm817, %v818, %v816
    %v820 = vrsqrt.pop %v804
    %v821 = vmul.f32 %v804, %v820
    %vm822 = vcmp.eq.f32.partialorder %v804, inf
    %v823 = vsel %vm822, %v804, %v821
    %vm824 = vcmp.eq.f32.partialorder %v804, 0.0
    %v825 = vand.u32 %v804, 2147483648
    %v826 = vsel %vm824, %v825, %v823
    %v827 = vrsqrt.pop %v805
    %v828 = vmul.f32 %v805, %v827
    %vm829 = vcmp.eq.f32.partialorder %v805, inf
    %v830 = vsel %vm829, %v805, %v828
    %vm831 = vcmp.eq.f32.partialorder %v805, 0.0
    %v832 = vand.u32 %v805, 2147483648
    %v833 = vsel %vm831, %v832, %v830
    %v834 = vsub.f32 %v762, %v812
    %v835 = vsub.f32 %v769, %v819
    %v836 = vsub.f32 %v776, %v826
    %v837 = vsub.f32 %v783, %v833
    %v838 = vand.u32 2147483647, %v834
    %v839 = vand.u32 2147483647, %v835
    %v840 = vand.u32 2147483647, %v836
    %v841 = vand.u32 2147483647, %v837
    %v846 = vrot.slane %v838, 2
    %v847 = vrot.slane %v839, 2
    %v848 = vsel %vm555, %v846, %v847
    %v849 = vrot.slane %v840, 2
    %v850 = vrot.slane %v841, 2
    %v851 = vsel %vm555, %v849, %v850
    %852 = vrot.lane.b32.xlu0 %v848, 113
    %v853 = vpop.permute.xlu0 %852
    %854 = vrot.lane.b32.xlu0 %v847, 113
    %v855 = vpop.permute.xlu0 %854
    %856 = vrot.lane.b32.xlu0 %v851, 113
    %v857 = vpop.permute.xlu0 %856
    %858 = vrot.lane.b32.xlu0 %v850, 113
    %v859 = vpop.permute.xlu0 %858
    %v864 = vsel %vm566, %v853, 0.0
    %v865 = vsel %vm568, %v855, 0.0
    %v866 = vadd.f32 %v864, %v865
    %v867 = vsel %vm566, %v857, 0.0
    %v868 = vadd.f32 %v866, %v867
    %v869 = vsel %vm568, %v859, 0.0
    %v870 = vadd.f32 %v868, %v869
    %871 = vadd.xlane.f32.xlu0 %v870
    %v872 = vpop.xlane.xlu0 %871
    %v873 = vrot.slane %v872, 4
    %v874 = vadd.f32 %v872, %v873
    %v875 = vrot.slane %v874, 2
    %v876 = vadd.f32 %v874, %v875
    %v877 = vrot.slane %v876, 1
    %v878 = vadd.f32 %v876, %v877
    %s879 = vtos %v878
    %s880 = sadd.f32 %s733, %s879
    %v881 = vrot.slane %v438, 1
    %v882 = vrot.slane %v439, 1
    %883 = vrot.lane.b32.xlu0 %v881, 127
    %v884 = vpop.permute.xlu0 %883
    %885 = vrot.lane.b32.xlu0 %v882, 127
    %v886 = vpop.permute.xlu0 %885
    %v889 = vadd.f32 %v734, %v884
    %v890 = vadd.f32 %v735, %v886
    %v891 = vadd.f32 %v889, 1e-06
    %v892 = vadd.f32 %v890, 1e-06
    %v893 = vrsqrt.pop %v891
    %v894 = vmul.f32 %v891, %v893
    %vm895 = vcmp.eq.f32.partialorder %v891, inf
    %v896 = vsel %vm895, %v891, %v894
    %vm897 = vcmp.eq.f32.partialorder %v891, 0.0
    %v898 = vand.u32 %v891, 2147483648
    %v899 = vsel %vm897, %v898, %v896
    %v900 = vrsqrt.pop %v892
    %v901 = vmul.f32 %v892, %v900
    %vm902 = vcmp.eq.f32.partialorder %v892, inf
    %v903 = vsel %vm902, %v892, %v901
    %vm904 = vcmp.eq.f32.partialorder %v892, 0.0
    %v905 = vand.u32 %v892, 2147483648
    %v906 = vsel %vm904, %v905, %v903
    %v907 = vrot.slane %v493, 1
    %v908 = vrot.slane %v494, 1
    %909 = vrot.lane.b32.xlu0 %v907, 127
    %v910 = vpop.permute.xlu0 %909
    %911 = vrot.lane.b32.xlu0 %v908, 127
    %v912 = vpop.permute.xlu0 %911
    %v915 = vadd.f32 %v784, %v910
    %v916 = vadd.f32 %v785, %v912
    %v917 = vadd.f32 %v915, 1e-06
    %v918 = vadd.f32 %v916, 1e-06
    %v919 = vrsqrt.pop %v917
    %v920 = vmul.f32 %v917, %v919
    %vm921 = vcmp.eq.f32.partialorder %v917, inf
    %v922 = vsel %vm921, %v917, %v920
    %vm923 = vcmp.eq.f32.partialorder %v917, 0.0
    %v924 = vand.u32 %v917, 2147483648
    %v925 = vsel %vm923, %v924, %v922
    %v926 = vrsqrt.pop %v918
    %v927 = vmul.f32 %v918, %v926
    %vm928 = vcmp.eq.f32.partialorder %v918, inf
    %v929 = vsel %vm928, %v918, %v927
    %vm930 = vcmp.eq.f32.partialorder %v918, 0.0
    %v931 = vand.u32 %v918, 2147483648
    %v932 = vsel %vm930, %v931, %v929
    %v933 = vsub.f32 %v899, %v925
    %v934 = vsub.f32 %v906, %v932
    %v935 = vand.u32 2147483647, %v933
    %v936 = vand.u32 2147483647, %v934
    %v939 = vrot.slane %v935, 6
    %v940 = vrot.slane %v936, 6
    %v943 = vsel %vm245, %v939, 0.0
    %v944 = vsel %vm245, %v940, 0.0
    %v945 = vadd.f32 %v943, %v944
    %946 = vadd.xlane.f32.xlu0 %v945
    %v947 = vpop.xlane.xlu0 %946
    %v948 = vrot.slane %v947, 4
    %v949 = vadd.f32 %v947, %v948
    %v950 = vrot.slane %v949, 2
    %v951 = vadd.f32 %v949, %v950
    %v952 = vrot.slane %v951, 1
    %v953 = vadd.f32 %v951, %v952
    %s954 = vtos %v953
    %s955 = sadd.f32 %s880, %s954
    %v956 = vrot.slane %v585, 1
    %v957 = vrot.slane %v586, 1
    %958 = vrot.lane.b32.xlu0 %v956, 127
    %v959 = vpop.permute.xlu0 %958
    %960 = vrot.lane.b32.xlu0 %v957, 127
    %v961 = vpop.permute.xlu0 %960
    %v964 = vadd.f32 %v734, %v959
    %v965 = vadd.f32 %v735, %v961
    %v966 = vadd.f32 %v964, 1e-06
    %v967 = vadd.f32 %v965, 1e-06
    %v968 = vrsqrt.pop %v966
    %v969 = vmul.f32 %v966, %v968
    %vm970 = vcmp.eq.f32.partialorder %v966, inf
    %v971 = vsel %vm970, %v966, %v969
    %vm972 = vcmp.eq.f32.partialorder %v966, 0.0
    %v973 = vand.u32 %v966, 2147483648
    %v974 = vsel %vm972, %v973, %v971
    %v975 = vrsqrt.pop %v967
    %v976 = vmul.f32 %v967, %v975
    %vm977 = vcmp.eq.f32.partialorder %v967, inf
    %v978 = vsel %vm977, %v967, %v976
    %vm979 = vcmp.eq.f32.partialorder %v967, 0.0
    %v980 = vand.u32 %v967, 2147483648
    %v981 = vsel %vm979, %v980, %v978
    %v982 = vrot.slane %v635, 1
    %v983 = vrot.slane %v636, 1
    %984 = vrot.lane.b32.xlu0 %v982, 127
    %v985 = vpop.permute.xlu0 %984
    %986 = vrot.lane.b32.xlu0 %v983, 127
    %v987 = vpop.permute.xlu0 %986
    %v990 = vadd.f32 %v784, %v985
    %v991 = vadd.f32 %v785, %v987
    %v992 = vadd.f32 %v990, 1e-06
    %v993 = vadd.f32 %v991, 1e-06
    %v994 = vrsqrt.pop %v992
    %v995 = vmul.f32 %v992, %v994
    %vm996 = vcmp.eq.f32.partialorder %v992, inf
    %v997 = vsel %vm996, %v992, %v995
    %vm998 = vcmp.eq.f32.partialorder %v992, 0.0
    %v999 = vand.u32 %v992, 2147483648
    %v1000 = vsel %vm998, %v999, %v997
    %v1001 = vrsqrt.pop %v993
    %v1002 = vmul.f32 %v993, %v1001
    %vm1003 = vcmp.eq.f32.partialorder %v993, inf
    %v1004 = vsel %vm1003, %v993, %v1002
    %vm1005 = vcmp.eq.f32.partialorder %v993, 0.0
    %v1006 = vand.u32 %v993, 2147483648
    %v1007 = vsel %vm1005, %v1006, %v1004
    %v1008 = vsub.f32 %v974, %v1000
    %v1009 = vsub.f32 %v981, %v1007
    %v1010 = vand.u32 2147483647, %v1008
    %v1011 = vand.u32 2147483647, %v1009
    %v1014 = vrot.slane %v1010, 6
    %v1015 = vrot.slane %v1011, 6
    %1016 = vrot.lane.b32.xlu0 %v1014, 127
    %v1017 = vpop.permute.xlu0 %1016
    %1018 = vrot.lane.b32.xlu0 %v1015, 127
    %v1019 = vpop.permute.xlu0 %1018
    %v1022 = vsel %vm333, %v1017, 0.0
    %v1023 = vsel %vm333, %v1019, 0.0
    %v1024 = vadd.f32 %v1022, %v1023
    %1025 = vadd.xlane.f32.xlu0 %v1024
    %v1026 = vpop.xlane.xlu0 %1025
    %v1027 = vrot.slane %v1026, 4
    %v1028 = vadd.f32 %v1026, %v1027
    %v1029 = vrot.slane %v1028, 2
    %v1030 = vadd.f32 %v1028, %v1029
    %v1031 = vrot.slane %v1030, 1
    %v1032 = vadd.f32 %v1030, %v1031
    %s1033 = vtos %v1032
    %s1034 = sadd.f32 %s955, %s1033
    %v1035 = vrot.slane %v734, 1
    %v1036 = vrot.slane %v735, 1
    %1037 = vrot.lane.b32.xlu0 %v1035, 1
    %v1038 = vpop.permute.xlu0 %1037
    %1039 = vrot.lane.b32.xlu0 %v1036, 1
    %v1040 = vpop.permute.xlu0 %1039
    %v1043 = vadd.f32 %v734, %v1038
    %v1044 = vadd.f32 %v735, %v1040
    %v1045 = vadd.f32 %v1043, 1e-06
    %v1046 = vadd.f32 %v1044, 1e-06
    %v1047 = vrsqrt.pop %v1045
    %v1048 = vmul.f32 %v1045, %v1047
    %vm1049 = vcmp.eq.f32.partialorder %v1045, inf
    %v1050 = vsel %vm1049, %v1045, %v1048
    %vm1051 = vcmp.eq.f32.partialorder %v1045, 0.0
    %v1052 = vand.u32 %v1045, 2147483648
    %v1053 = vsel %vm1051, %v1052, %v1050
    %v1054 = vrsqrt.pop %v1046
    %v1055 = vmul.f32 %v1046, %v1054
    %vm1056 = vcmp.eq.f32.partialorder %v1046, inf
    %v1057 = vsel %vm1056, %v1046, %v1055
    %vm1058 = vcmp.eq.f32.partialorder %v1046, 0.0
    %v1059 = vand.u32 %v1046, 2147483648
    %v1060 = vsel %vm1058, %v1059, %v1057
    %v1061 = vrot.slane %v784, 1
    %v1062 = vrot.slane %v785, 1
    %1063 = vrot.lane.b32.xlu0 %v1061, 1
    %v1064 = vpop.permute.xlu0 %1063
    %1065 = vrot.lane.b32.xlu0 %v1062, 1
    %v1066 = vpop.permute.xlu0 %1065
    %v1069 = vadd.f32 %v784, %v1064
    %v1070 = vadd.f32 %v785, %v1066
    %v1071 = vadd.f32 %v1069, 1e-06
    %v1072 = vadd.f32 %v1070, 1e-06
    %v1073 = vrsqrt.pop %v1071
    %v1074 = vmul.f32 %v1071, %v1073
    %vm1075 = vcmp.eq.f32.partialorder %v1071, inf
    %v1076 = vsel %vm1075, %v1071, %v1074
    %vm1077 = vcmp.eq.f32.partialorder %v1071, 0.0
    %v1078 = vand.u32 %v1071, 2147483648
    %v1079 = vsel %vm1077, %v1078, %v1076
    %v1080 = vrsqrt.pop %v1072
    %v1081 = vmul.f32 %v1072, %v1080
    %vm1082 = vcmp.eq.f32.partialorder %v1072, inf
    %v1083 = vsel %vm1082, %v1072, %v1081
    %vm1084 = vcmp.eq.f32.partialorder %v1072, 0.0
    %v1085 = vand.u32 %v1072, 2147483648
    %v1086 = vsel %vm1084, %v1085, %v1083
    %v1087 = vsub.f32 %v1053, %v1079
    %v1088 = vsub.f32 %v1060, %v1086
    %v1089 = vand.u32 2147483647, %v1087
    %v1090 = vand.u32 2147483647, %v1088
    %v1093 = vrot.slane %v1089, 6
    %v1094 = vrot.slane %v1090, 6
    %1095 = vrot.lane.b32.xlu0 %v1093, 113
    %v1096 = vpop.permute.xlu0 %1095
    %1097 = vrot.lane.b32.xlu0 %v1094, 113
    %v1098 = vpop.permute.xlu0 %1097
    %v1101 = vsel %vm245, %v1096, 0.0
    %v1102 = vsel %vm245, %v1098, 0.0
    %v1103 = vadd.f32 %v1101, %v1102
    %1104 = vadd.xlane.f32.xlu0 %v1103
    %v1105 = vpop.xlane.xlu0 %1104
    %v1106 = vrot.slane %v1105, 4
    %v1107 = vadd.f32 %v1105, %v1106
    %v1108 = vrot.slane %v1107, 2
    %v1109 = vadd.f32 %v1107, %v1108
    %v1110 = vrot.slane %v1109, 1
    %v1111 = vadd.f32 %v1109, %v1110
    %s1112 = vtos %v1111
    %s1113 = sadd.f32 %s1034, %s1112
    %s1114 = scalar_lea.smem [#allocation7], 0
    %1115 = sst [smem:[%s1114]] %s1113
    // Predicated region
    $region18: #{tpu_custom_call.1} parent=1 // pred_check
      _
    $region19: #{tpu_custom_call.1} parent=1 // pred_check_branch
      %1117 = sbr.rel (0) target = $region21
    $region20: #{tpu_custom_call.1} parent=1 // pred_region
      %s1119 = ssub.s32 16, 16
      %1120 = vsyncadd [#allocation4], %s1119
      %1123 = dma.smem_to_hbm [#allocation7], 16, %s2, [#allocation4]
    $region21: #{tpu_custom_call.1} parent=1 // pred_fallthru
      _
    // Predicated region
    $region22: #{tpu_custom_call.1} parent=1 // pred_check
      _
    $region23: #{tpu_custom_call.1} parent=1 // pred_check_branch
      %1125 = sbr.rel (0) target = $region25
    $region24: #{tpu_custom_call.1} parent=1 // pred_region
      %1126 = dma.done [#allocation4], 16
    $region25: #{tpu_custom_call.1} parent=1 // pred_fallthru
      _
    %1127 = sfence
    %1128 = vsyncpa [#allocation3], 1
    %1129 = vsyncpa [#allocation6], 1
    %1130 = vsyncpa [#allocation4], 1

</llo_original>
